<compile_context>
chip_gen: v7x
topology: tpu7x:2x2x1
jax: 0.10.0
libtpu: 0.0.40
codegen_flags: <defaults>
</compile_context>

<pallas_src>
import math

import jax
import jax.numpy as jnp
from jax.experimental import pallas as pl
from jax.experimental.pallas import tpu as pltpu

_AMP = 1.0 / math.sqrt(2.0 * math.pi)
_SQRT2 = math.sqrt(2.0)
_LOG_SQRT_2PI = 0.5 * math.log(2.0 * math.pi)   # == -log(_AMP)

_LANES = 128


def _round_up(x, m):
    return ((x + m - 1) // m) * m


def _make_rle_kernel(*, n_valid, block_rows, chunks_per_core, use_roll_w0):
    """Builds the RLE-loss kernel with static parameters baked in."""

    def body(nf_ref, pred_ref, sigma_ref, gt_ref, w_ref, w0_ref,
             loss_out_ref, w_out_ref):
        j = pl.program_id(1)

        # Output blocks are resident across the (arbitrary) chunk axis ->
        # use them directly as per-core accumulators.
        @pl.when(j == 0)
        def _init():
            loss_out_ref[...] = jnp.zeros_like(loss_out_ref)
            w_out_ref[...] = jnp.zeros_like(w_out_ref)

        # Logical (unclamped) chunk id.  The index_map clamps the DMA source so
        # duplicated chunks re-read a valid block; the mask below zeroes them.
        chunk = pl.program_id(0) * chunks_per_core + j

        nf = nf_ref[...].astype(jnp.float32)       # (block_rows, 128)
        pred = pred_ref[...].astype(jnp.float32)
        sigma = sigma_ref[...].astype(jnp.float32)
        gt = gt_ref[...].astype(jnp.float32)
        w = w_ref[...].astype(jnp.float32)

        shp = (block_rows, _LANES)
        row = jax.lax.broadcasted_iota(jnp.int32, shp, 0)
        lane = jax.lax.broadcasted_iota(jnp.int32, shp, 1)
        flat_idx = (chunk * block_rows + row) * _LANES + lane
        valid = flat_idx < n_valid                 # masks tail pad, partial and
                                                   # duplicated blocks at once.
        w_m = jnp.where(valid, w, 0.0)

        if use_roll_w0:
            # D == 2, D innermost: channel-0 weights live on even lanes.
            rolled = pltpu.roll(w_m, shift=1, axis=1)          # XLU, ~free
            w0 = jnp.where((lane & 1) == 0, w_m, rolled)
        else:
            w0 = jnp.where(valid, w0_ref[...].astype(jnp.float32), 0.0)

        # logQ = log(sigma/amp) + |gt-pred| / (sqrt(2)*sigma + 1e-9)
        #      = log(sigma) + 0.5*log(2*pi) + |gt-pred| * recip(sqrt(2)*sigma + 1e-9)
        inv_den = pl.reciprocal(_SQRT2 * sigma + 1e-9)          # exact; HBM-bound
        logq = jnp.log(sigma) + _LOG_SQRT_2PI + jnp.abs(gt - pred) * inv_den

        # select (not *0) so NaN/Inf from garbage rows never reach the sum.
        loss = jnp.where(valid, nf * w0 + logq * w_m, 0.0)

        # Per-lane partial sums only (pure VPU adds + one cheap sublane reduce);
        # the cross-lane reduce happens once, in the wrapper epilogue.
        loss_out_ref[...] += jnp.sum(loss, axis=0).reshape(1, 1, _LANES)
        w_out_ref[...] += jnp.sum(w_m, axis=0).reshape(1, 1, _LANES)

    if use_roll_w0:
        def kernel(nf_ref, pred_ref, sigma_ref, gt_ref, w_ref,
                   loss_out_ref, w_out_ref):
            body(nf_ref, pred_ref, sigma_ref, gt_ref, w_ref, None,
                 loss_out_ref, w_out_ref)
        return kernel
    return body


def rle_loss(nf_loss, pred_jts, sigma, target_uv, target_uv_weight,
             size_average=True, block_rows=None):
    """Pallas implementation of RLELoss.forward (residual=True)."""
    shape = pred_jts.shape                         # (B, K, D)
    batch = shape[0]
    d = shape[-1]
    n = math.prod(shape)

    use_roll_w0 = (d == 2)

    w_bkd = target_uv_weight.reshape(shape)
    flats = [nf_loss.reshape(-1),
             pred_jts.reshape(-1),
             sigma.reshape(-1),
             target_uv.reshape(-1),
             w_bkd.reshape(-1)]
    if not use_roll_w0:
        # TODO(synk): generic-D fallback pays one extra broadcast tensor of HBM
        # traffic; the fast D==2 path derives w0 in-kernel with an XLU roll.
        flats.append(jnp.broadcast_to(w_bkd[..., :1], shape).reshape(-1))

    # Flat, lane-dense (rows, 128) view.  Only a <1024-element tail is ever
    # padded (values are irrelevant — the kernel masks on the true count), so
    # there is no wrapper-side transpose / full-tensor relayout pass.
    n_pad = max(_round_up(n, _LANES), 8 * _LANES)
    if n_pad != n:
        flats = [jnp.pad(f, (0, n_pad - n)) for f in flats]
    rows = n_pad // _LANES
    views = [f.reshape(rows, _LANES) for f in flats]

    # Dense (8m, 128) blocks: ~2 MiB per input per step for large inputs; for
    # small inputs split the rows between the two v7x TensorCores.
    if block_rows is None:
        block_rows = min(4096, _round_up(pl.cdiv(rows, 2), 8))
    block_rows = max(8, min(block_rows, (rows // 8) * 8))
    assert block_rows % 8 == 0

    total_chunks = pl.cdiv(rows, block_rows)
    cpc = pl.cdiv(total_chunks, 2)                 # chunks per core

    def chunk_index(i, j):
        # Clamp so the DMA never walks past the array; duplicated chunks are
        # masked to zero inside the kernel.
        return (jnp.minimum(i * cpc + j, total_chunks - 1), 0)

    in_spec = pl.BlockSpec((block_rows, _LANES), chunk_index)
    out_spec = pl.BlockSpec((1, 1, _LANES), lambda i, j: (i, 0, 0))

    kernel = _make_rle_kernel(n_valid=n, block_rows=block_rows,
                              chunks_per_core=cpc, use_roll_w0=use_roll_w0)

    loss_part, w_part = pl.pallas_call(
        kernel,
        out_shape=(jax.ShapeDtypeStruct((2, 1, _LANES), jnp.float32),
                   jax.ShapeDtypeStruct((2, 1, _LANES), jnp.float32)),
        grid_spec=pltpu.PrefetchScalarGridSpec(
            num_scalar_prefetch=0,
            grid=(2, cpc),
            in_specs=[in_spec] * len(views),
            out_specs=[out_spec, out_spec],
        ),
        compiler_params=pltpu.CompilerParams(
            dimension_semantics=("parallel", "arbitrary"),
            vmem_limit_bytes=32 * 1024 * 1024,     # 5 in x 2 buf x 2 MiB fits all gens
        ),
    )(*views)

    # Tiny epilogue: combine the two per-core lane-partials and apply the
    # size_average / weight_sum>0 branch (value-equivalent jnp.where).
    loss_sum = jnp.sum(loss_part)
    w_sum = jnp.sum(w_part)
    if size_average:
        return jnp.where(w_sum > 0.0, loss_sum / batch, loss_sum)
    return loss_sum


def _reference(nf_loss, pred_jts, sigma, target_uv, target_uv_weight,
               size_average=True):
    shape = pred_jts.shape
    gt_uv = target_uv.reshape(shape)
    gt_w = target_uv_weight.reshape(shape)
    nf = nf_loss * gt_w[..., :1]
    logq = jnp.log(sigma / _AMP) + jnp.abs(gt_uv - pred_jts) / (_SQRT2 * sigma + 1e-9)
    loss = nf + logq * gt_w
    total = loss.sum()
    if size_average:
        return jnp.where(gt_w.sum() > 0, total / shape[0], total)
    return total


def _make_inputs(key, B, K, D):
    k1, k2, k3, k4, k5 = jax.random.split(key, 5)
    nf_loss = jax.random.normal(k1, (B, K, D), dtype=jnp.float32)
    pred_jts = jax.random.normal(k2, (B, K, D), dtype=jnp.float32) * 0.5
    # sigma is positive (upstream sigmoid)
    sigma = jax.nn.sigmoid(jax.random.normal(k3, (B, K, D), dtype=jnp.float32)) + 1e-3
    target_uv = jax.random.normal(k4, (B, K * D), dtype=jnp.float32) * 0.5
    target_uv_weight = (jax.random.uniform(k5, (B, K * D)) > 0.2).astype(jnp.float32)
    return nf_loss, pred_jts, sigma, target_uv, target_uv_weight


if __name__ == "__main__":
    key = jax.random.PRNGKey(0)
    keys = jax.random.split(key, 4)

    def check(args, **kw):
        out = jax.block_until_ready(rle_loss(*args, **kw))
        ref = _reference(*args, size_average=kw.get("size_average", True))
        assert jnp.allclose(out, ref, rtol=5e-3, atol=5e-2), (out, ref)

    # 1) tiny D==2 case: single chunk, heavy lane/row masking, core-1 fully masked.
    check(_make_inputs(keys[0], 2, 16, 2))

    # 2) two row-chunks -> one per TensorCore on v7x (sequential elsewhere).
    check(_make_inputs(keys[1], 16, 64, 2))

    # 3) many chunks with an odd chunk count: exercises the clamped/duplicated
    #    chunk and the accumulate-over-j path; also size_average=False.
    args = _make_inputs(keys[2], 32, 80, 2)
    check(args, block_rows=8)
    check(args, block_rows=8, size_average=False)

    # 4) D != 2 fallback path (explicit w0 input).
    check(_make_inputs(keys[3], 2, 16, 3))

    print("KERNEL_OK")
</pallas_src>

<mosaic_0001>
module attributes {stable_mosaic.version = 11 : i64} {
  func.func @kernel(%arg0: i32, %arg1: i32, %arg2: memref<8x128xf32, #tpu.memory_space<vmem>>, %arg3: memref<8x128xf32, #tpu.memory_space<vmem>>, %arg4: memref<8x128xf32, #tpu.memory_space<vmem>>, %arg5: memref<8x128xf32, #tpu.memory_space<vmem>>, %arg6: memref<8x128xf32, #tpu.memory_space<vmem>>, %arg7: memref<1x1x128xf32, #tpu.memory_space<vmem>>, %arg8: memref<1x1x128xf32, #tpu.memory_space<vmem>>) attributes {dimension_semantics = [#tpu.dimension_semantics<parallel>, #tpu.dimension_semantics<arbitrary>], iteration_bounds = array<i64: 2, 1>, scalar_prefetch = 0 : i64, scratch_operands = 0 : i64, tpu.core_type = #tpu.core_type<tc>, window_params = [{transform_indices = @transform_0, window_bounds = array<i64: 8, 128>}, {transform_indices = @transform_1, window_bounds = array<i64: 8, 128>}, {transform_indices = @transform_2, window_bounds = array<i64: 8, 128>}, {transform_indices = @transform_3, window_bounds = array<i64: 8, 128>}, {transform_indices = @transform_4, window_bounds = array<i64: 8, 128>}, {transform_indices = @transform_5, window_bounds = array<i64: 1, 1, 128>}, {transform_indices = @transform_6, window_bounds = array<i64: 1, 1, 128>}]} {
    %c0_i32 = arith.constant 0 : i32
    %0 = arith.cmpi eq, %arg1, %c0_i32 : i32
    %1 = arith.extui %0 : i1 to i32
    %c0_i32_0 = arith.constant 0 : i32
    %2 = arith.cmpi ne, %1, %c0_i32_0 : i32
    scf.if %2 {
      %cst_31 = arith.constant 0.000000e+00 : f32
      %55 = vector.broadcast %cst_31 : f32 to vector<1x1x128xf32>
      %c0_32 = arith.constant 0 : index
      %c0_33 = arith.constant 0 : index
      %c0_34 = arith.constant 0 : index
      %56 = vector.load %arg7[%c0_32, %c0_33, %c0_34] : memref<1x1x128xf32, #tpu.memory_space<vmem>>, vector<1x1x128xf32>
      tpu.vector_store %arg7[%c0_32, %c0_33, %c0_34], %55 {strides = array<i32>} : memref<1x1x128xf32, #tpu.memory_space<vmem>>, vector<1x1x128xf32>,
      %cst_35 = arith.constant 0.000000e+00 : f32
      %57 = vector.broadcast %cst_35 : f32 to vector<1x1x128xf32>
      %c0_36 = arith.constant 0 : index
      %c0_37 = arith.constant 0 : index
      %c0_38 = arith.constant 0 : index
      %58 = vector.load %arg8[%c0_36, %c0_37, %c0_38] : memref<1x1x128xf32, #tpu.memory_space<vmem>>, vector<1x1x128xf32>
      tpu.vector_store %arg8[%c0_36, %c0_37, %c0_38], %57 {strides = array<i32>} : memref<1x1x128xf32, #tpu.memory_space<vmem>>, vector<1x1x128xf32>,
    } else {
    }
    %c1_i32 = arith.constant 1 : i32
    %3 = arith.muli %arg0, %c1_i32 : i32
    %4 = arith.addi %3, %arg1 : i32
    %c0 = arith.constant 0 : index
    %c0_1 = arith.constant 0 : index
    %5 = vector.load %arg2[%c0, %c0_1] : memref<8x128xf32, #tpu.memory_space<vmem>>, vector<8x128xf32>
    %c0_2 = arith.constant 0 : index
    %c0_3 = arith.constant 0 : index
    %6 = vector.load %arg3[%c0_2, %c0_3] : memref<8x128xf32, #tpu.memory_space<vmem>>, vector<8x128xf32>
    %c0_4 = arith.constant 0 : index
    %c0_5 = arith.constant 0 : index
    %7 = vector.load %arg4[%c0_4, %c0_5] : memref<8x128xf32, #tpu.memory_space<vmem>>, vector<8x128xf32>
    %c0_6 = arith.constant 0 : index
    %c0_7 = arith.constant 0 : index
    %8 = vector.load %arg5[%c0_6, %c0_7] : memref<8x128xf32, #tpu.memory_space<vmem>>, vector<8x128xf32>
    %c0_8 = arith.constant 0 : index
    %c0_9 = arith.constant 0 : index
    %9 = vector.load %arg6[%c0_8, %c0_9] : memref<8x128xf32, #tpu.memory_space<vmem>>, vector<8x128xf32>
    %10 = tpu.iota {dimensions = array<i32: 0>} : vector<8x128xi32>
    %11 = tpu.iota {dimensions = array<i32: 1>} : vector<8x128xi32>
    %c8_i32 = arith.constant 8 : i32
    %12 = arith.muli %4, %c8_i32 : i32
    %13 = vector.broadcast %12 : i32 to vector<8x128xi32>
    %14 = arith.addi %13, %10 : vector<8x128xi32>
    %c128_i32 = arith.constant 128 : i32
    %15 = vector.broadcast %c128_i32 : i32 to vector<8x128xi32>
    %16 = arith.muli %14, %15 : vector<8x128xi32>
    %17 = arith.addi %16, %11 : vector<8x128xi32>
    %c64_i32 = arith.constant 64 : i32
    %18 = vector.broadcast %c64_i32 : i32 to vector<8x128xi32>
    %19 = arith.cmpi slt, %17, %18 : vector<8x128xi32>
    %cst = arith.constant 0.000000e+00 : f32
    %20 = vector.broadcast %cst : f32 to vector<8x128xf32>
    %21 = arith.select %19, %9, %20 : vector<8x128xi1>, vector<8x128xf32>
    %c1_i32_10 = arith.constant 1 : i32
    %22 = tpu.dynamic_rotate %21 by %c1_i32_10 dim 1 : vector<8x128xf32>, i32 -> vector<8x128xf32>
    %c1_i32_11 = arith.constant 1 : i32
    %23 = vector.broadcast %c1_i32_11 : i32 to vector<8x128xi32>
    %24 = arith.andi %11, %23 : vector<8x128xi32>
    %c0_i32_12 = arith.constant 0 : i32
    %25 = vector.broadcast %c0_i32_12 : i32 to vector<8x128xi32>
    %26 = arith.cmpi eq, %24, %25 : vector<8x128xi32>
    %27 = arith.select %26, %21, %22 : vector<8x128xi1>, vector<8x128xf32>
    %cst_13 = arith.constant 1.41421354 : f32
    %28 = vector.broadcast %cst_13 : f32 to vector<8x128xf32>
    %29 = arith.mulf %28, %7 : vector<8x128xf32>
    %cst_14 = arith.constant 9.99999971E-10 : f32
    %30 = vector.broadcast %cst_14 : f32 to vector<8x128xf32>
    %31 = arith.addf %29, %30 : vector<8x128xf32>
    %32 = tpu.reciprocal %31 : vector<8x128xf32> -> vector<8x128xf32>
    %33 = math.log %7 : vector<8x128xf32>
    %cst_15 = arith.constant 0.918938517 : f32
    %34 = vector.broadcast %cst_15 : f32 to vector<8x128xf32>
    %35 = arith.addf %33, %34 : vector<8x128xf32>
    %36 = arith.subf %8, %6 : vector<8x128xf32>
    %37 = math.absf %36 : vector<8x128xf32>
    %38 = arith.mulf %37, %32 : vector<8x128xf32>
    %39 = arith.addf %35, %38 : vector<8x128xf32>
    %40 = arith.mulf %5, %27 : vector<8x128xf32>
    %41 = arith.mulf %39, %21 : vector<8x128xf32>
    %42 = arith.addf %40, %41 : vector<8x128xf32>
    %cst_16 = arith.constant 0.000000e+00 : f32
    %43 = vector.broadcast %cst_16 : f32 to vector<8x128xf32>
    %44 = arith.select %19, %42, %43 : vector<8x128xi1>, vector<8x128xf32>
    %c0_17 = arith.constant 0 : index
    %c0_18 = arith.constant 0 : index
    %c0_19 = arith.constant 0 : index
    %45 = vector.load %arg7[%c0_17, %c0_18, %c0_19] : memref<1x1x128xf32, #tpu.memory_space<vmem>>, vector<1x1x128xf32>
    %cst_20 = arith.constant dense<0.000000e+00> : vector<128xf32>
    %46 = vector.multi_reduction <add>, %44, %cst_20 [0] : vector<8x128xf32> to vector<128xf32>
    %47 = vector.shape_cast %46 : vector<128xf32> to vector<1x1x128xf32>
    %48 = arith.addf %45, %47 : vector<1x1x128xf32>
    %c0_21 = arith.constant 0 : index
    %c0_22 = arith.constant 0 : index
    %c0_23 = arith.constant 0 : index
    %49 = vector.load %arg7[%c0_21, %c0_22, %c0_23] : memref<1x1x128xf32, #tpu.memory_space<vmem>>, vector<1x1x128xf32>
    tpu.vector_store %arg7[%c0_21, %c0_22, %c0_23], %48 {strides = array<i32>} : memref<1x1x128xf32, #tpu.memory_space<vmem>>, vector<1x1x128xf32>,
    %c0_24 = arith.constant 0 : index
    %c0_25 = arith.constant 0 : index
    %c0_26 = arith.constant 0 : index
    %50 = vector.load %arg8[%c0_24, %c0_25, %c0_26] : memref<1x1x128xf32, #tpu.memory_space<vmem>>, vector<1x1x128xf32>
    %cst_27 = arith.constant dense<0.000000e+00> : vector<128xf32>
    %51 = vector.multi_reduction <add>, %21, %cst_27 [0] : vector<8x128xf32> to vector<128xf32>
    %52 = vector.shape_cast %51 : vector<128xf32> to vector<1x1x128xf32>
    %53 = arith.addf %50, %52 : vector<1x1x128xf32>
    %c0_28 = arith.constant 0 : index
    %c0_29 = arith.constant 0 : index
    %c0_30 = arith.constant 0 : index
    %54 = vector.load %arg8[%c0_28, %c0_29, %c0_30] : memref<1x1x128xf32, #tpu.memory_space<vmem>>, vector<1x1x128xf32>
    tpu.vector_store %arg8[%c0_28, %c0_29, %c0_30], %53 {strides = array<i32>} : memref<1x1x128xf32, #tpu.memory_space<vmem>>, vector<1x1x128xf32>,
    return
  }
  func.func @transform_0(%arg0: i32, %arg1: i32) -> (i32, i32) {
    %c1_i32 = arith.constant 1 : i32
    %0 = arith.muli %arg0, %c1_i32 : i32
    %1 = arith.addi %0, %arg1 : i32
    %c0_i32 = arith.constant 0 : i32
    %2 = arith.minsi %1, %c0_i32 : i32
    %c0_i32_0 = arith.constant 0 : i32
    %c0_i32_1 = arith.constant 0 : i32
    return %2, %c0_i32_0 : i32, i32
  }
  func.func @transform_1(%arg0: i32, %arg1: i32) -> (i32, i32) {
    %c1_i32 = arith.constant 1 : i32
    %0 = arith.muli %arg0, %c1_i32 : i32
    %1 = arith.addi %0, %arg1 : i32
    %c0_i32 = arith.constant 0 : i32
    %2 = arith.minsi %1, %c0_i32 : i32
    %c0_i32_0 = arith.constant 0 : i32
    %c0_i32_1 = arith.constant 0 : i32
    return %2, %c0_i32_0 : i32, i32
  }
  func.func @transform_2(%arg0: i32, %arg1: i32) -> (i32, i32) {
    %c1_i32 = arith.constant 1 : i32
    %0 = arith.muli %arg0, %c1_i32 : i32
    %1 = arith.addi %0, %arg1 : i32
    %c0_i32 = arith.constant 0 : i32
    %2 = arith.minsi %1, %c0_i32 : i32
    %c0_i32_0 = arith.constant 0 : i32
    %c0_i32_1 = arith.constant 0 : i32
    return %2, %c0_i32_0 : i32, i32
  }
  func.func @transform_3(%arg0: i32, %arg1: i32) -> (i32, i32) {
    %c1_i32 = arith.constant 1 : i32
    %0 = arith.muli %arg0, %c1_i32 : i32
    %1 = arith.addi %0, %arg1 : i32
    %c0_i32 = arith.constant 0 : i32
    %2 = arith.minsi %1, %c0_i32 : i32
    %c0_i32_0 = arith.constant 0 : i32
    %c0_i32_1 = arith.constant 0 : i32
    return %2, %c0_i32_0 : i32, i32
  }
  func.func @transform_4(%arg0: i32, %arg1: i32) -> (i32, i32) {
    %c1_i32 = arith.constant 1 : i32
    %0 = arith.muli %arg0, %c1_i32 : i32
    %1 = arith.addi %0, %arg1 : i32
    %c0_i32 = arith.constant 0 : i32
    %2 = arith.minsi %1, %c0_i32 : i32
    %c0_i32_0 = arith.constant 0 : i32
    %c0_i32_1 = arith.constant 0 : i32
    return %2, %c0_i32_0 : i32, i32
  }
  func.func @transform_5(%arg0: i32, %arg1: i32) -> (i32, i32, i32) {
    %c0_i32 = arith.constant 0 : i32
    %c0_i32_0 = arith.constant 0 : i32
    %c0_i32_1 = arith.constant 0 : i32
    return %arg0, %c0_i32, %c0_i32_0 : i32, i32, i32
  }
  func.func @transform_6(%arg0: i32, %arg1: i32) -> (i32, i32, i32) {
    %c0_i32 = arith.constant 0 : i32
    %c0_i32_0 = arith.constant 0 : i32
    %c0_i32_1 = arith.constant 0 : i32
    return %arg0, %c0_i32, %c0_i32_0 : i32, i32, i32
  }
}

</mosaic_0001>

<llo_original>
// kernel: tpu_custom_call.1
$region0: #{tpu_custom_call.1}
  #allocation0 [shape = 'u32[]', space=smem, size = 0x4, offset = 0x4, fixed_abs, tag = 'smem constant byte address 0x4 - core index']
  #allocation1 [shape = 'u32[144,128]{1,0:T(1,128)}', space=vmem, size = 0x12000, scoped, tag = 'internal scratch']
  %s0 = inlined_call_operand.hbm [shape: f32[8,128], index: 0, kind: input, shape index: {}]
  %s1 = inlined_call_operand.hbm [shape: f32[8,128], index: 1, kind: input, shape index: {}]
  %s2 = inlined_call_operand.hbm [shape: f32[8,128], index: 2, kind: input, shape index: {}]
  %s3 = inlined_call_operand.vmem [shape: f32[8,128], index: 3, kind: input, shape index: {}]
  %s4 = inlined_call_operand.hbm [shape: f32[8,128], index: 4, kind: input, shape index: {}]
  %s5 = inlined_call_operand.hbm [shape: f32[2,1,128], index: 5, kind: output, shape index: {0}]
  %s6 = inlined_call_operand.hbm [shape: f32[2,1,128], index: 6, kind: output, shape index: {1}]
  %7 = xla_tuple %s5, %s6
  %s8 = sld [smem:[#allocation0]]
  $region81: #{tpu_custom_call.1} parent=0
    _
  %s10 = ssub.s32 1, %s8
  %s11 = scalar_select 0, %s10, %s8
  $region1: #{tpu_custom_call.1} parent=0
    #allocation2 [shape = 'u8[8192]{0}', space=vmem, size = 0x2000, scoped, tag = 'input window, operand 0']
    #allocation3 [shape = 's32[2]{0}', space=sflag, size = 0x8, scoped, tag = 'scoped memory for tpu_custom_call.1']
    #allocation4 [shape = 's32[2]{0}', space=sflag, size = 0x8, scoped, tag = 'scoped memory for tpu_custom_call.1']
    #allocation5 [shape = 'u8[8192]{0}', space=vmem, size = 0x2000, scoped, tag = 'input window, operand 1']
    #allocation6 [shape = 's32[2]{0}', space=sflag, size = 0x8, scoped, tag = 'scoped memory for tpu_custom_call.1']
    #allocation7 [shape = 'u8[8192]{0}', space=vmem, size = 0x2000, scoped, tag = 'input window, operand 2']
    #allocation8 [shape = 'u8[8192]{0}', space=vmem, size = 0x2000, scoped, tag = 'input window, operand 4']
    #allocation9 [shape = 's32[2]{0}', space=sflag, size = 0x8, scoped, tag = 'scoped memory for tpu_custom_call.1']
    #allocation10 [shape = 'u8[1024]{0}', space=vmem, size = 0x400, scoped, tag = 'output window, operand 0']
    #allocation11 [shape = 'u8[1024]{0}', space=vmem, size = 0x400, scoped, tag = 'output window, operand 1']
    #allocation12 [shape = 's32[2]{0}', space=sflag, size = 0x8, scoped, tag = 'scoped memory for tpu_custom_call.1']
    %12 = vsyncpa [#allocation3], 0
    %s13 = scalar_lea.sflag [#allocation3], 1
    %14 = vsyncpa %s13, 0
    %15 = vsyncpa [#allocation6], 0
    %s16 = scalar_lea.sflag [#allocation6], 1
    %17 = vsyncpa %s16, 0
    %18 = vsyncpa [#allocation9], 0
    %s19 = scalar_lea.sflag [#allocation9], 1
    %20 = vsyncpa %s19, 0
    %21 = vsyncpa [#allocation4], 0
    %s22 = scalar_lea.sflag [#allocation4], 1
    %23 = vsyncpa %s22, 0
    %24 = vsyncpa [#allocation12], 0
    %s25 = scalar_lea.sflag [#allocation12], 1
    %26 = vsyncpa %s25, 0
    loop: start=0, step=1, limit=4
    $region2: #{tpu_custom_call.1} parent=1 // loop_pre_header
      _
    $region3: #{tpu_custom_call.1} parent=1 // loop_header
      %s28 = sphi 0, %s32
      %p29 = scmp.ge.s32.totalorder %s28, 4
      %s35 = sphi 0, %s47
      %s36 = sphi 0, %s43
      %s37 = sphi 0, %s35
      %s38 = sphi 0, %s36
      %s39 = sphi 0, %s37
      %s40 = sphi 0, %s38
      %s56 = sphi 0, %s58
      %s59 = sphi 0, %s56
      %s60 = sphi 0, %s59
      %s76 = sphi 0, %s60
      %s88 = sphi 0, %s90
      %s91 = sphi 0, %s88
      %s92 = sphi 0, %s91
      %s108 = sphi 0, %s92
      %s120 = sphi 0, %s122
      %s123 = sphi 0, %s120
      %s124 = sphi 0, %s123
      %s140 = sphi 0, %s124
      %s152 = sphi 0, %s154
      %s155 = sphi 0, %s152
      %s156 = sphi 0, %s155
      %s172 = sphi 0, %s156
      %s184 = sphi 0, %s186
      %s187 = sphi 0, %s184
      %s188 = sphi 0, %s187
      %s204 = sphi 0, %s188
      %s210 = sphi 0, %s212
      %s213 = sphi 0, %s210
      %s214 = sphi 0, %s213
      %s230 = sphi 0, %s214
      %s236 = sphi 0, %s238
      %s239 = sphi 0, %s236
      %s240 = sphi 0, %s239
      %s256 = sphi 0, %s240
    $region4: #{tpu_custom_call.1} parent=1 // loop_header_branch
      %31 = sbr.rel (%p29) target = $region8
    $region5: #{tpu_custom_call.1} parent=1 // loop_body
      %s33 = ssub.s32 %s28, 1
      %s34 = ssub.s32 %s28, 2
      %s41 = sadd.s32 1, %s36
      %p42 = scmp.ge.s32.totalorder %s41, 1
      %s43 = scalar_select %p42, 0, %s41
      %s44 = sadd.s32 1, %s35
      %s45 = scalar_select %p42, %s44, %s35
      %p46 = scmp.ge.s32.totalorder %s45, 2
      %s47 = scalar_select %p46, 0, %s45
      %s48 = sadd.s32 %s35, %s36
      %p49 = scmp.lt.s32.totalorder %s48, 0
      %s50 = scalar_select %p49, %s48, 0
      %s51 = sadd.s32 %s47, %s43
      %p52 = scmp.lt.s32.totalorder %s51, 0
      %s53 = scalar_select %p52, %s51, 0
      %s54 = ssub.s32 %s50, %s53
      %p55 = scmp.eq.s32.totalorder %s54, 0
      %s57 = sadd.s32 %s56, 1
      %s58 = scalar_select %p55, %s56, %s57
      %p61 = pneg %p55
      %p62 = scmp.eq.s32.totalorder %s28, 1
      %p63 = por %p61, %p62
      %p64 = scmp.ne.s32.totalorder %s56, %s59
      %p65 = scmp.eq.s32.totalorder %s28, 0
      %p66 = por %p64, %p65
      %p67 = scmp.ne.s32.totalorder %s56, %s59
      %p68 = scmp.eq.s32.totalorder %s33, 1
      %p69 = por %p67, %p68
      %p70 = scmp.ne.s32.totalorder %s59, %s60
      %p71 = scmp.eq.s32.totalorder %s33, 0
      %p72 = por %p70, %p71
      %p73 = scmp.ne.s32.totalorder %s59, %s60
      %p74 = scmp.eq.s32.totalorder %s34, 1
      %p75 = por %p73, %p74
      %p77 = scmp.ne.s32.totalorder %s60, %s76
      %p78 = scmp.eq.s32.totalorder %s34, 0
      %p79 = por %p77, %p78
      %s80 = sadd.s32 %s35, %s36
      %p81 = scmp.lt.s32.totalorder %s80, 0
      %s82 = scalar_select %p81, %s80, 0
      %s83 = sadd.s32 %s47, %s43
      %p84 = scmp.lt.s32.totalorder %s83, 0
      %s85 = scalar_select %p84, %s83, 0
      %s86 = ssub.s32 %s82, %s85
      %p87 = scmp.eq.s32.totalorder %s86, 0
      %s89 = sadd.s32 %s88, 1
      %s90 = scalar_select %p87, %s88, %s89
      %p93 = pneg %p87
      %p94 = scmp.eq.s32.totalorder %s28, 1
      %p95 = por %p93, %p94
      %p96 = scmp.ne.s32.totalorder %s88, %s91
      %p97 = scmp.eq.s32.totalorder %s28, 0
      %p98 = por %p96, %p97
      %p99 = scmp.ne.s32.totalorder %s88, %s91
      %p100 = scmp.eq.s32.totalorder %s33, 1
      %p101 = por %p99, %p100
      %p102 = scmp.ne.s32.totalorder %s91, %s92
      %p103 = scmp.eq.s32.totalorder %s33, 0
      %p104 = por %p102, %p103
      %p105 = scmp.ne.s32.totalorder %s91, %s92
      %p106 = scmp.eq.s32.totalorder %s34, 1
      %p107 = por %p105, %p106
      %p109 = scmp.ne.s32.totalorder %s92, %s108
      %p110 = scmp.eq.s32.totalorder %s34, 0
      %p111 = por %p109, %p110
      %s112 = sadd.s32 %s35, %s36
      %p113 = scmp.lt.s32.totalorder %s112, 0
      %s114 = scalar_select %p113, %s112, 0
      %s115 = sadd.s32 %s47, %s43
      %p116 = scmp.lt.s32.totalorder %s115, 0
      %s117 = scalar_select %p116, %s115, 0
      %s118 = ssub.s32 %s114, %s117
      %p119 = scmp.eq.s32.totalorder %s118, 0
      %s121 = sadd.s32 %s120, 1
      %s122 = scalar_select %p119, %s120, %s121
      %p125 = pneg %p119
      %p126 = scmp.eq.s32.totalorder %s28, 1
      %p127 = por %p125, %p126
      %p128 = scmp.ne.s32.totalorder %s120, %s123
      %p129 = scmp.eq.s32.totalorder %s28, 0
      %p130 = por %p128, %p129
      %p131 = scmp.ne.s32.totalorder %s120, %s123
      %p132 = scmp.eq.s32.totalorder %s33, 1
      %p133 = por %p131, %p132
      %p134 = scmp.ne.s32.totalorder %s123, %s124
      %p135 = scmp.eq.s32.totalorder %s33, 0
      %p136 = por %p134, %p135
      %p137 = scmp.ne.s32.totalorder %s123, %s124
      %p138 = scmp.eq.s32.totalorder %s34, 1
      %p139 = por %p137, %p138
      %p141 = scmp.ne.s32.totalorder %s124, %s140
      %p142 = scmp.eq.s32.totalorder %s34, 0
      %p143 = por %p141, %p142
      %s144 = sadd.s32 %s35, %s36
      %p145 = scmp.lt.s32.totalorder %s144, 0
      %s146 = scalar_select %p145, %s144, 0
      %s147 = sadd.s32 %s47, %s43
      %p148 = scmp.lt.s32.totalorder %s147, 0
      %s149 = scalar_select %p148, %s147, 0
      %s150 = ssub.s32 %s146, %s149
      %p151 = scmp.eq.s32.totalorder %s150, 0
      %s153 = sadd.s32 %s152, 1
      %s154 = scalar_select %p151, %s152, %s153
      %p157 = pneg %p151
      %p158 = scmp.eq.s32.totalorder %s28, 1
      %p159 = por %p157, %p158
      %p160 = scmp.ne.s32.totalorder %s152, %s155
      %p161 = scmp.eq.s32.totalorder %s28, 0
      %p162 = por %p160, %p161
      %p163 = scmp.ne.s32.totalorder %s152, %s155
      %p164 = scmp.eq.s32.totalorder %s33, 1
      %p165 = por %p163, %p164
      %p166 = scmp.ne.s32.totalorder %s155, %s156
      %p167 = scmp.eq.s32.totalorder %s33, 0
      %p168 = por %p166, %p167
      %p169 = scmp.ne.s32.totalorder %s155, %s156
      %p170 = scmp.eq.s32.totalorder %s34, 1
      %p171 = por %p169, %p170
      %p173 = scmp.ne.s32.totalorder %s156, %s172
      %p174 = scmp.eq.s32.totalorder %s34, 0
      %p175 = por %p173, %p174
      %s176 = sadd.s32 %s35, %s36
      %p177 = scmp.lt.s32.totalorder %s176, 0
      %s178 = scalar_select %p177, %s176, 0
      %s179 = sadd.s32 %s47, %s43
      %p180 = scmp.lt.s32.totalorder %s179, 0
      %s181 = scalar_select %p180, %s179, 0
      %s182 = ssub.s32 %s178, %s181
      %p183 = scmp.eq.s32.totalorder %s182, 0
      %s185 = sadd.s32 %s184, 1
      %s186 = scalar_select %p183, %s184, %s185
      %p189 = pneg %p183
      %p190 = scmp.eq.s32.totalorder %s28, 1
      %p191 = por %p189, %p190
      %p192 = scmp.ne.s32.totalorder %s184, %s187
      %p193 = scmp.eq.s32.totalorder %s28, 0
      %p194 = por %p192, %p193
      %p195 = scmp.ne.s32.totalorder %s184, %s187
      %p196 = scmp.eq.s32.totalorder %s33, 1
      %p197 = por %p195, %p196
      %p198 = scmp.ne.s32.totalorder %s187, %s188
      %p199 = scmp.eq.s32.totalorder %s33, 0
      %p200 = por %p198, %p199
      %p201 = scmp.ne.s32.totalorder %s187, %s188
      %p202 = scmp.eq.s32.totalorder %s34, 1
      %p203 = por %p201, %p202
      %p205 = scmp.ne.s32.totalorder %s188, %s204
      %p206 = scmp.eq.s32.totalorder %s34, 0
      %p207 = por %p205, %p206
      %s208 = ssub.s32 %s35, %s47
      %p209 = scmp.eq.s32.totalorder %s208, 0
      %s211 = sadd.s32 %s210, 1
      %s212 = scalar_select %p209, %s210, %s211
      %p215 = pneg %p209
      %p216 = scmp.eq.s32.totalorder %s28, 1
      %p217 = por %p215, %p216
      %p218 = scmp.ne.s32.totalorder %s210, %s213
      %p219 = scmp.eq.s32.totalorder %s28, 0
      %p220 = por %p218, %p219
      %p221 = scmp.ne.s32.totalorder %s210, %s213
      %p222 = scmp.eq.s32.totalorder %s33, 1
      %p223 = por %p221, %p222
      %p224 = scmp.ne.s32.totalorder %s213, %s214
      %p225 = scmp.eq.s32.totalorder %s33, 0
      %p226 = por %p224, %p225
      %p227 = scmp.ne.s32.totalorder %s213, %s214
      %p228 = scmp.eq.s32.totalorder %s34, 1
      %p229 = por %p227, %p228
      %p231 = scmp.ne.s32.totalorder %s214, %s230
      %p232 = scmp.eq.s32.totalorder %s34, 0
      %p233 = por %p231, %p232
      %s234 = ssub.s32 %s35, %s47
      %p235 = scmp.eq.s32.totalorder %s234, 0
      %s237 = sadd.s32 %s236, 1
      %s238 = scalar_select %p235, %s236, %s237
      %p241 = pneg %p235
      %p242 = scmp.eq.s32.totalorder %s28, 1
      %p243 = por %p241, %p242
      %p244 = scmp.ne.s32.totalorder %s236, %s239
      %p245 = scmp.eq.s32.totalorder %s28, 0
      %p246 = por %p244, %p245
      %p247 = scmp.ne.s32.totalorder %s236, %s239
      %p248 = scmp.eq.s32.totalorder %s33, 1
      %p249 = por %p247, %p248
      %p250 = scmp.ne.s32.totalorder %s239, %s240
      %p251 = scmp.eq.s32.totalorder %s33, 0
      %p252 = por %p250, %p251
      %p253 = scmp.ne.s32.totalorder %s239, %s240
      %p254 = scmp.eq.s32.totalorder %s34, 1
      %p255 = por %p253, %p254
      %p257 = scmp.ne.s32.totalorder %s240, %s256
      %p258 = scmp.eq.s32.totalorder %s34, 0
      %p259 = por %p257, %p258
      %p260 = scmp.le.s32.totalorder 1, %s28
      %p261 = scmp.lt.s32.totalorder %s28, 3
      %p262 = pnand %p260, %p261
      %p263 = pneg %p262
      // Predicated region
      $region9: #{tpu_custom_call.1} parent=5 // pred_check
        _
      $region10: #{tpu_custom_call.1} parent=5 // pred_check_branch
        %265 = sbr.rel (%p262) target = $region12
      $region11: #{tpu_custom_call.1} parent=5 // pred_region
        %s266 = ssub.s32 %s28, 1
      $region12: #{tpu_custom_call.1} parent=5 // pred_fallthru
        _
      %p267 = scmp.lt.s32.totalorder %s28, 2
      // Predicated region
      $region13: #{tpu_custom_call.1} parent=5 // pred_check
        %p268 = pneg %p267
      $region14: #{tpu_custom_call.1} parent=5 // pred_check_branch
        %270 = sbr.rel (%p268) target = $region16
      $region15: #{tpu_custom_call.1} parent=5 // pred_region
        // Predicated region
        $region17: #{tpu_custom_call.1} parent=15 // pred_check
          %p271 = pneg %p66
        $region18: #{tpu_custom_call.1} parent=15 // pred_check_branch
          %273 = sbr.rel (%p271) target = $region20
        $region19: #{tpu_custom_call.1} parent=15 // pred_region
          %s274 = sand.u32 %s56, 1
          %s275 = scalar_lea.sflag [#allocation3], %s274
          %s276 = sand.u32 %s56, 1
          %s277 = smul.addr %s276, 8
          %s278 = scalar_lea.vmem [#allocation2], %s277
          %s279 = sadd.s32 %s35, %s36
          %p280 = scmp.lt.s32.totalorder %s279, 0
          %s281 = scalar_select %p280, %s279, 0
          %s283 = ssub.s32 128, 128
          %284 = vsyncadd %s275, %s283
          %s285 = smul.addr %s281, 128
          %s286 = scalar_lea.hbm %s0, %s285
          %s288 = sshll.u32 %s278, 4
          %s289 = int_to_ptr.vmem [resolvable:$true] %s288
          %291 = dma.hbm_to_vmem [thread:$0]  %s286, 128, %s289, %s275
        $region20: #{tpu_custom_call.1} parent=15 // pred_fallthru
          _
        // Predicated region
        $region21: #{tpu_custom_call.1} parent=15 // pred_check
          %p292 = pneg %p98
        $region22: #{tpu_custom_call.1} parent=15 // pred_check_branch
          %294 = sbr.rel (%p292) target = $region24
        $region23: #{tpu_custom_call.1} parent=15 // pred_region
          %s295 = sand.u32 %s28, 1
          %s296 = scalar_lea.sflag [#allocation6], %s295
          %s297 = sand.u32 %s88, 1
          %s298 = smul.addr %s297, 8
          %s299 = scalar_lea.vmem [#allocation5], %s298
          %s300 = sadd.s32 %s35, %s36
          %p301 = scmp.lt.s32.totalorder %s300, 0
          %s302 = scalar_select %p301, %s300, 0
          %s304 = ssub.s32 128, 128
          %305 = vsyncadd %s296, %s304
          %s306 = smul.addr %s302, 128
          %s307 = scalar_lea.hbm %s1, %s306
          %s309 = sshll.u32 %s299, 4
          %s310 = int_to_ptr.vmem [resolvable:$true] %s309
          %312 = dma.hbm_to_vmem [thread:$0]  %s307, 128, %s310, %s296
        $region24: #{tpu_custom_call.1} parent=15 // pred_fallthru
          _
        // Predicated region
        $region25: #{tpu_custom_call.1} parent=15 // pred_check
          %p313 = pneg %p130
        $region26: #{tpu_custom_call.1} parent=15 // pred_check_branch
          %315 = sbr.rel (%p313) target = $region28
        $region27: #{tpu_custom_call.1} parent=15 // pred_region
          %s316 = sand.u32 %s28, 1
          %s317 = scalar_lea.sflag [#allocation6], %s316
          %s318 = sand.u32 %s120, 1
          %s319 = smul.addr %s318, 8
          %s320 = scalar_lea.vmem [#allocation7], %s319
          %s321 = sadd.s32 %s35, %s36
          %p322 = scmp.lt.s32.totalorder %s321, 0
          %s323 = scalar_select %p322, %s321, 0
          %s325 = ssub.s32 128, 128
          %326 = vsyncadd %s317, %s325
          %s327 = smul.addr %s323, 128
          %s328 = scalar_lea.hbm %s2, %s327
          %s330 = sshll.u32 %s320, 4
          %s331 = int_to_ptr.vmem [resolvable:$true] %s330
          %333 = dma.hbm_to_vmem [thread:$0]  %s328, 128, %s331, %s317
        $region28: #{tpu_custom_call.1} parent=15 // pred_fallthru
          _
        // Predicated region
        $region29: #{tpu_custom_call.1} parent=15 // pred_check
          %p334 = pneg %p162
        $region30: #{tpu_custom_call.1} parent=15 // pred_check_branch
          %336 = sbr.rel (%p334) target = $region32
        $region31: #{tpu_custom_call.1} parent=15 // pred_region
          %s337 = sadd.s32 %s35, %s36
          %p338 = scmp.lt.s32.totalorder %s337, 0
          %s339 = scalar_select %p338, %s337, 0
          %p340 = scmp.lt.s32.totalorder %s339, 0
          %s341 = scalar_select %p340, %s339, 0
          %s342 = smul.addr %s341, 8
          %s343 = scalar_lea.vmem %s3, %s342
          %s344 = sadd.s32 %s35, %s36
          %p345 = scmp.lt.s32.totalorder %s344, 0
          %s346 = scalar_select %p345, %s344, 0
        $region32: #{tpu_custom_call.1} parent=15 // pred_fallthru
          _
        // Predicated region
        $region33: #{tpu_custom_call.1} parent=15 // pred_check
          %p347 = pneg %p194
        $region34: #{tpu_custom_call.1} parent=15 // pred_check_branch
          %349 = sbr.rel (%p347) target = $region36
        $region35: #{tpu_custom_call.1} parent=15 // pred_region
          %s350 = sand.u32 %s184, 1
          %s351 = scalar_lea.sflag [#allocation9], %s350
          %s352 = sand.u32 %s184, 1
          %s353 = smul.addr %s352, 8
          %s354 = scalar_lea.vmem [#allocation8], %s353
          %s355 = sadd.s32 %s35, %s36
          %p356 = scmp.lt.s32.totalorder %s355, 0
          %s357 = scalar_select %p356, %s355, 0
          %s359 = ssub.s32 128, 128
          %360 = vsyncadd %s351, %s359
          %s361 = smul.addr %s357, 128
          %s362 = scalar_lea.hbm %s4, %s361
          %s364 = sshll.u32 %s354, 4
          %s365 = int_to_ptr.vmem [resolvable:$true] %s364
          %367 = dma.hbm_to_vmem [thread:$0]  %s362, 128, %s365, %s351
        $region36: #{tpu_custom_call.1} parent=15 // pred_fallthru
          _
      $region16: #{tpu_custom_call.1} parent=5 // pred_fallthru
        _
      %p368 = scmp.le.s32.totalorder 1, %s28
      %p369 = scmp.lt.s32.totalorder %s28, 3
      %p370 = pnand %p368, %p369
      %p371 = pneg %p370
      // Predicated region
      $region37: #{tpu_custom_call.1} parent=5 // pred_check
        _
      $region38: #{tpu_custom_call.1} parent=5 // pred_check_branch
        %373 = sbr.rel (%p370) target = $region40
      $region39: #{tpu_custom_call.1} parent=5 // pred_region
        %s374 = ssub.s32 %s28, 1
        %s375 = sand.u32 %s59, 1
        %s376 = scalar_lea.sflag [#allocation3], %s375
        %s377 = sand.u32 %s59, 1
        %s378 = smul.addr %s377, 8
        %s379 = scalar_lea.vmem [#allocation2], %s378
        // Predicated region
        $region41: #{tpu_custom_call.1} parent=39 // pred_check
          %p380 = pneg %p72
        $region42: #{tpu_custom_call.1} parent=39 // pred_check_branch
          %382 = sbr.rel (%p380) target = $region44
        $region43: #{tpu_custom_call.1} parent=39 // pred_region
          %383 = dma.done %s376, 128
        $region44: #{tpu_custom_call.1} parent=39 // pred_fallthru
          _
        %s384 = sand.u32 %s33, 1
        %s385 = scalar_lea.sflag [#allocation6], %s384
        %s386 = sand.u32 %s91, 1
        %s387 = smul.addr %s386, 8
        %s388 = scalar_lea.vmem [#allocation5], %s387
        // Predicated region
        $region45: #{tpu_custom_call.1} parent=39 // pred_check
          %p389 = pneg %p104
        $region46: #{tpu_custom_call.1} parent=39 // pred_check_branch
          %391 = sbr.rel (%p389) target = $region48
        $region47: #{tpu_custom_call.1} parent=39 // pred_region
          %392 = dma.done %s385, 128
        $region48: #{tpu_custom_call.1} parent=39 // pred_fallthru
          _
        %s393 = sand.u32 %s33, 1
        %s394 = scalar_lea.sflag [#allocation6], %s393
        %s395 = sand.u32 %s123, 1
        %s396 = smul.addr %s395, 8
        %s397 = scalar_lea.vmem [#allocation7], %s396
        // Predicated region
        $region49: #{tpu_custom_call.1} parent=39 // pred_check
          %p398 = pneg %p136
        $region50: #{tpu_custom_call.1} parent=39 // pred_check_branch
          %400 = sbr.rel (%p398) target = $region52
        $region51: #{tpu_custom_call.1} parent=39 // pred_region
          %401 = dma.done %s394, 128
        $region52: #{tpu_custom_call.1} parent=39 // pred_fallthru
          _
        %s402 = sand.u32 %s187, 1
        %s403 = scalar_lea.sflag [#allocation9], %s402
        %s404 = sand.u32 %s187, 1
        %s405 = smul.addr %s404, 8
        %s406 = scalar_lea.vmem [#allocation8], %s405
        // Predicated region
        $region53: #{tpu_custom_call.1} parent=39 // pred_check
          %p407 = pneg %p200
        $region54: #{tpu_custom_call.1} parent=39 // pred_check_branch
          %409 = sbr.rel (%p407) target = $region56
        $region55: #{tpu_custom_call.1} parent=39 // pred_region
          %410 = dma.done %s403, 128
        $region56: #{tpu_custom_call.1} parent=39 // pred_fallthru
          _
        %s411 = sand.u32 %s59, 1
        %s412 = scalar_lea.sflag [#allocation3], %s411
        %s413 = sand.u32 %s59, 1
        %s414 = smul.addr %s413, 8
        %s415 = scalar_lea.vmem [#allocation2], %s414
        %p416 = pneg %p72
        %p417 = pneg %p69
        %s418 = sand.u32 %s33, 1
        %s419 = scalar_lea.sflag [#allocation6], %s418
        %s420 = sand.u32 %s91, 1
        %s421 = smul.addr %s420, 8
        %s422 = scalar_lea.vmem [#allocation5], %s421
        %p423 = pneg %p104
        %p424 = pneg %p101
        %s425 = sand.u32 %s33, 1
        %s426 = scalar_lea.sflag [#allocation6], %s425
        %s427 = sand.u32 %s123, 1
        %s428 = smul.addr %s427, 8
        %s429 = scalar_lea.vmem [#allocation7], %s428
        %p430 = pneg %p136
        %p431 = pneg %p133
        %s432 = sadd.s32 %s37, %s38
        %p433 = scmp.lt.s32.totalorder %s432, 0
        %s434 = scalar_select %p433, %s432, 0
        %p435 = scmp.lt.s32.totalorder %s434, 0
        %s436 = scalar_select %p435, %s434, 0
        %s437 = smul.addr %s436, 8
        %s438 = scalar_lea.vmem %s3, %s437
        %p439 = pneg %p168
        %p440 = pneg %p165
        %s441 = sand.u32 %s187, 1
        %s442 = scalar_lea.sflag [#allocation9], %s441
        %s443 = sand.u32 %s187, 1
        %s444 = smul.addr %s443, 8
        %s445 = scalar_lea.vmem [#allocation8], %s444
        %p446 = pneg %p200
        %p447 = pneg %p197
        %p448 = pneg %p226
        %p449 = pneg %p223
        %s450 = sand.u32 %s213, 1
        %s451 = scalar_lea.sflag [#allocation4], %s450
        %s452 = sand.u32 %s213, 1
        %s453 = scalar_lea.vmem [#allocation10], %s452
        %p454 = pneg %p252
        %p455 = pneg %p249
        %s456 = sand.u32 %s239, 1
        %s457 = scalar_lea.sflag [#allocation12], %s456
        %s458 = sand.u32 %s239, 1
        %s459 = scalar_lea.vmem [#allocation11], %s458
        %s460 = sadd.s32 %s37, %s38
        %p461 = scmp.lt.s32.totalorder %s460, 0
        %s462 = scalar_select %p461, %s460, 0
        %s463 = sadd.s32 %s37, %s38
        %p464 = scmp.lt.s32.totalorder %s463, 0
        %s465 = scalar_select %p464, %s463, 0
        %s466 = sadd.s32 %s37, %s38
        %p467 = scmp.lt.s32.totalorder %s466, 0
        %s468 = scalar_select %p467, %s466, 0
        %s469 = sadd.s32 %s37, %s38
        %p470 = scmp.lt.s32.totalorder %s469, 0
        %s471 = scalar_select %p470, %s469, 0
        %p472 = scmp.lt.s32.totalorder %s471, 0
        %s473 = scalar_select %p472, %s471, 0
        %s474 = smul.addr %s473, 8
        %s475 = scalar_lea.vmem %s3, %s474
        %s476 = sadd.s32 %s37, %s38
        %p477 = scmp.lt.s32.totalorder %s476, 0
        %s478 = scalar_select %p477, %s476, 0
        %s479 = sadd.s32 %s37, %s38
        %p480 = scmp.lt.s32.totalorder %s479, 0
        %s481 = scalar_select %p480, %s479, 0
        %p482 = scmp.eq.s32.totalorder %s38, 0
        // Predicated region
        $region57: #{tpu_custom_call.1} parent=39 // pred_check
          %p483 = pneg %p482
        $region58: #{tpu_custom_call.1} parent=39 // pred_check_branch
          %485 = sbr.rel (%p483) target = $region60
        $region59: #{tpu_custom_call.1} parent=39 // pred_region
          %486 = vst [vmem:[%s453] sm:$0x1] 0.0
          %487 = vst [vmem:[%s459] sm:$0x1] 0.0
        $region60: #{tpu_custom_call.1} parent=39 // pred_fallthru
          _
        %s488 = sadd.s32 %s37, %s38
        %v489 = vld [vmem:[%s379] sm:$0xff]
        %v490 = vld [vmem:[%s388] sm:$0xff]
        %v491 = vld [vmem:[%s397] sm:$0xff]
        %v492 = vld [vmem:[%s475] sm:$0xff]
        %v493 = vld [vmem:[%s406] sm:$0xff]
        %v494 = vlaneseq
        %v495 = vshrl.u32 %v494, 7
        %v496 = vlaneseq
        %v497 = vand.u32 %v496, 127
        %s498 = smul.u32 %s488, 8
        %v499 = vstv %s498
        %v500 = vadd.s32 %v499, %v495
        %v501 = vmul.u32 %v500, 128
        %v502 = vadd.s32 %v501, %v497
        %vm503 = vcmp.lt.s32.totalorder %v502, 64
        %v504 = vsel %vm503, %v493, 0.0
        %505 = vrot.lane.b32.xlu0 %v504, 1
        %v506 = vpop.permute.xlu0 %505
        %v507 = vand.u32 %v497, 1
        %vm508 = vcmp.eq.s32.totalorder %v507, 0
        %v509 = vsel %vm508, %v504, %v506
        %v510 = vmul.f32 %v491, 1.4142135
        %v511 = vadd.f32 %v510, 1e-09
        %v512 = vrcp.pop %v511
        %v513 = vlog2.pop %v491
        %v514 = vmul.f32 %v513, 0.6931472
        %v515 = vadd.f32 %v514, 0.9189385
        %v516 = vsub.f32 %v492, %v490
        %v517 = vand.u32 2147483647, %v516
        %v518 = vmul.f32 %v517, %v512
        %v519 = vadd.f32 %v515, %v518
        %v520 = vmul.f32 %v489, %v509
        %v521 = vmul.f32 %v519, %v504
        %v522 = vadd.f32 %v520, %v521
        %v523 = vsel %vm503, %v522, 0.0
        %v524 = vld [vmem:[%s453] sm:$0x1]
        %v525 = vrot.slane %v523, 4
        %v526 = vadd.f32 %v523, %v525
        %v527 = vrot.slane %v526, 2
        %v528 = vadd.f32 %v526, %v527
        %v529 = vrot.slane %v528, 1
        %v530 = vadd.f32 %v528, %v529
        %v531 = vadd.f32 %v524, %v530
        %532 = vst [vmem:[%s453] sm:$0x1] %v531
        %v533 = vld [vmem:[%s459] sm:$0x1]
        %v534 = vrot.slane %v504, 4
        %v535 = vadd.f32 %v504, %v534
        %v536 = vrot.slane %v535, 2
        %v537 = vadd.f32 %v535, %v536
        %v538 = vrot.slane %v537, 1
        %v539 = vadd.f32 %v537, %v538
        %v540 = vadd.f32 %v533, %v539
        %541 = vst [vmem:[%s459] sm:$0x1] %v540
        %s542 = sand.u32 %s213, 1
        %s543 = scalar_lea.sflag [#allocation4], %s542
        %s544 = sand.u32 %s213, 1
        %s545 = scalar_lea.vmem [#allocation10], %s544
        %s546 = sand.u32 %s239, 1
        %s547 = scalar_lea.sflag [#allocation12], %s546
        %s548 = sand.u32 %s239, 1
        %s549 = scalar_lea.vmem [#allocation11], %s548
        // Predicated region
        $region61: #{tpu_custom_call.1} parent=39 // pred_check
          %p550 = pneg %p223
        $region62: #{tpu_custom_call.1} parent=39 // pred_check_branch
          %552 = sbr.rel (%p550) target = $region64
        $region63: #{tpu_custom_call.1} parent=39 // pred_region
          %s554 = ssub.s32 16, 16
          %555 = vsyncadd %s543, %s554
          %s556 = smul.addr %s37, 16
          %s557 = scalar_lea.hbm %s5, %s556
          %s559 = sshll.u32 %s545, 4
          %s560 = int_to_ptr.vmem [resolvable:$true] %s559
          %562 = dma.vmem_to_hbm [thread:$0]  %s560, 16, %s557, %s543
        $region64: #{tpu_custom_call.1} parent=39 // pred_fallthru
          _
        // Predicated region
        $region65: #{tpu_custom_call.1} parent=39 // pred_check
          %p563 = pneg %p249
        $region66: #{tpu_custom_call.1} parent=39 // pred_check_branch
          %565 = sbr.rel (%p563) target = $region68
        $region67: #{tpu_custom_call.1} parent=39 // pred_region
          %s567 = ssub.s32 16, 16
          %568 = vsyncadd %s547, %s567
          %s569 = smul.addr %s37, 16
          %s570 = scalar_lea.hbm %s6, %s569
          %s572 = sshll.u32 %s549, 4
          %s573 = int_to_ptr.vmem [resolvable:$true] %s572
          %575 = dma.vmem_to_hbm [thread:$0]  %s573, 16, %s570, %s547
        $region68: #{tpu_custom_call.1} parent=39 // pred_fallthru
          _
      $region40: #{tpu_custom_call.1} parent=5 // pred_fallthru
        _
      %p576 = scmp.le.s32.totalorder 2, %s28
      // Predicated region
      $region69: #{tpu_custom_call.1} parent=5 // pred_check
        %p577 = pneg %p576
      $region70: #{tpu_custom_call.1} parent=5 // pred_check_branch
        %579 = sbr.rel (%p577) target = $region72
      $region71: #{tpu_custom_call.1} parent=5 // pred_region
        %s580 = ssub.s32 %s28, 2
        // Predicated region
        $region73: #{tpu_custom_call.1} parent=71 // pred_check
          %p581 = pneg %p229
        $region74: #{tpu_custom_call.1} parent=71 // pred_check_branch
          %583 = sbr.rel (%p581) target = $region76
        $region75: #{tpu_custom_call.1} parent=71 // pred_region
          %s584 = sand.u32 %s214, 1
          %s585 = scalar_lea.sflag [#allocation4], %s584
          %s586 = sand.u32 %s214, 1
          %s587 = scalar_lea.vmem [#allocation10], %s586
          %588 = dma.done %s585, 16
        $region76: #{tpu_custom_call.1} parent=71 // pred_fallthru
          _
        // Predicated region
        $region77: #{tpu_custom_call.1} parent=71 // pred_check
          %p589 = pneg %p255
        $region78: #{tpu_custom_call.1} parent=71 // pred_check_branch
          %591 = sbr.rel (%p589) target = $region80
        $region79: #{tpu_custom_call.1} parent=71 // pred_region
          %s592 = sand.u32 %s240, 1
          %s593 = scalar_lea.sflag [#allocation12], %s592
          %s594 = sand.u32 %s240, 1
          %s595 = scalar_lea.vmem [#allocation11], %s594
          %596 = dma.done %s593, 16
        $region80: #{tpu_custom_call.1} parent=71 // pred_fallthru
          _
      $region72: #{tpu_custom_call.1} parent=5 // pred_fallthru
        _
    $region6: #{tpu_custom_call.1} parent=1 // loop_footer
      %s32 = sadd.s32 1, %s28
    $region7: #{tpu_custom_call.1} parent=1 // loop_footer_branch
      %27 = sbr.rel target = $region3
    $region8: #{tpu_custom_call.1} parent=1 // loop_exit
      _
    %597 = vsyncpa [#allocation3], 1
    %s598 = scalar_lea.sflag [#allocation3], 1
    %599 = vsyncpa %s598, 1
    %600 = vsyncpa [#allocation6], 1
    %s601 = scalar_lea.sflag [#allocation6], 1
    %602 = vsyncpa %s601, 1
    %603 = vsyncpa [#allocation9], 1
    %s604 = scalar_lea.sflag [#allocation9], 1
    %605 = vsyncpa %s604, 1
    %606 = vsyncpa [#allocation4], 1
    %s607 = scalar_lea.sflag [#allocation4], 1
    %608 = vsyncpa %s607, 1
    %609 = vsyncpa [#allocation12], 1
    %s610 = scalar_lea.sflag [#allocation12], 1
    %611 = vsyncpa %s610, 1

</llo_original>
